<compile_context>
chip_gen: v6e
topology: v6e:2x2x1
jax: 0.10.0
libtpu: 0.0.40
codegen_flags: <defaults>
</compile_context>

<pallas_src>
import jax
import jax.numpy as jnp
from jax.experimental import pallas as pl
from jax.experimental.pallas import tpu as pltpu


def _cdiv(a, b):
    return -(-a // b)


def _round_up(x, m):
    return _cdiv(x, m) * m


def _num_tensorcores():
    """Best-effort TensorCore count per chip (v7x exposes 2 to one Pallas grid)."""
    try:
        kind = jax.devices()[0].device_kind.lower()
    except Exception:
        return 1
    return 2 if ("v7" in kind or "7x" in kind) else 1


def _choose_batch_tiling(B, num_tcs, max_tile_b=2048):
    """Pick (tile_b, B_padded): 8-row aligned, one step/TC for small B, and only
    more grid steps per TC when a tile would exceed max_tile_b rows."""
    per_tc = _cdiv(B, num_tcs)
    steps_per_tc = max(1, _cdiv(per_tc, max_tile_b))
    tile_b = _round_up(_cdiv(per_tc, steps_per_tc), 8)
    B_p = tile_b * num_tcs * steps_per_tc
    return tile_b, B_p


def mlp_kernel(x_ref, w1_ref, b1_ref, w2_ref, b2_ref, o_ref):
    # First linear: cast x to bf16 in-kernel (VPU), bf16 x bf16 on the MXU,
    # f32 accumulation.
    x = x_ref[...].astype(jnp.bfloat16)
    h = jnp.dot(x, w1_ref[...], preferred_element_type=jnp.float32)
    h = jnp.maximum(h + b1_ref[...], 0.0)            # bias + ReLU in f32 (VPU)
    # Second linear: hidden back to bf16 for the MXU, f32 accumulation.
    z = jnp.dot(h.astype(jnp.bfloat16), w2_ref[...],
                preferred_element_type=jnp.float32)
    z = z + b2_ref[...]
    # Sigmoid = 1 / (1 + exp(-z)); exp and the approx reciprocal both run on the EUP.
    o_ref[...] = pl.reciprocal(1.0 + jnp.exp(-z), approx=True).astype(o_ref.dtype)


def prepare_params(w1, b1, w2, b2):
    """One-time parameter prep (hoisted out of the per-call path):
    weights (already in (in, out) layout, i.e. transposed from torch.nn.Linear)
    are cast to bf16 for the MXU; biases become f32 row vectors."""
    return (w1.astype(jnp.bfloat16),
            b1.astype(jnp.float32).reshape(1, -1),
            w2.astype(jnp.bfloat16),
            b2.astype(jnp.float32).reshape(1, -1))


def mlp_forward(x, w1b, b1r, w2b, b2r):
    """x: (B, D_in) f32; w1b: (D_in, D_h) bf16; b1r: (1, D_h) f32;
    w2b: (D_h, D_o) bf16; b2r: (1, D_o) f32. Returns (B, D_o) in x.dtype."""
    B, D_in = x.shape
    D_h = w1b.shape[1]
    D_o = w2b.shape[1]

    num_tcs = _num_tensorcores()
    tile_b, B_p = _choose_batch_tiling(B, num_tcs)

    # Only pad the batch (to 8-row sublane x TC granularity); feature dims stay
    # unpadded — their block dims equal the full array dims, which is legal.
    if B_p != B:
        x_in = jnp.zeros((B_p, D_in), x.dtype).at[:B].set(x)
    else:
        x_in = x

    grid = (B_p // tile_b,)

    cost = pl.CostEstimate(
        flops=2 * B_p * D_in * D_h + 2 * B_p * D_h * D_o,
        transcendentals=B_p * D_o,                     # sigmoid exp
        bytes_accessed=(x_in.size * x_in.dtype.itemsize
                        + w1b.size * 2 + w2b.size * 2
                        + b1r.size * 4 + b2r.size * 4
                        + B_p * D_o * 4),
    )

    out = pl.pallas_call(
        mlp_kernel,
        out_shape=jax.ShapeDtypeStruct((B_p, D_o), x.dtype),
        grid_spec=pltpu.PrefetchScalarGridSpec(
            num_scalar_prefetch=0,
            grid=grid,
            in_specs=[
                pl.BlockSpec((tile_b, D_in), lambda i: (i, 0)),  # x tile over batch
                pl.BlockSpec((D_in, D_h), lambda i: (0, 0)),     # W1 resident
                pl.BlockSpec((1, D_h), lambda i: (0, 0)),        # b1 resident
                pl.BlockSpec((D_h, D_o), lambda i: (0, 0)),      # W2 resident
                pl.BlockSpec((1, D_o), lambda i: (0, 0)),        # b2 resident
            ],
            out_specs=pl.BlockSpec((tile_b, D_o), lambda i: (i, 0)),
        ),
        compiler_params=pltpu.CompilerParams(
            # Batch tiles shard across TensorCores on v7x; single step elsewhere.
            dimension_semantics=("parallel",),
        ),
        cost_estimate=cost,
    )(x_in, w1b, b1r, w2b, b2r)

    if B_p != B:
        out = out[:B]
    return out


if __name__ == "__main__":
    # arch = (D_in, D_hidden, D_out) — small MLP.
    D_in, D_hidden, D_out = 16, 32, 8
    B = 512

    key = jax.random.PRNGKey(0)
    kx, kw1, kb1, kw2, kb2 = jax.random.split(key, 5)

    # Deterministic parameter init (PyTorch Linear-style uniform bounds),
    # stored in (in, out) layout (transposed from torch.nn.Linear.weight).
    bound1 = 1.0 / (D_in ** 0.5)
    bound2 = 1.0 / (D_hidden ** 0.5)
    w1 = jax.random.uniform(kw1, (D_in, D_hidden), jnp.float32, -bound1, bound1)
    b1 = jax.random.uniform(kb1, (D_hidden,), jnp.float32, -bound1, bound1)
    w2 = jax.random.uniform(kw2, (D_hidden, D_out), jnp.float32, -bound2, bound2)
    b2 = jax.random.uniform(kb2, (D_out,), jnp.float32, -bound2, bound2)

    x = jax.random.normal(kx, (B, D_in), jnp.float32)

    # One-time parameter prep (hoisted out of the forward path), then jit the forward.
    w1b, b1r, w2b, b2r = prepare_params(w1, b1, w2, b2)
    fwd = jax.jit(mlp_forward)

    out = fwd(x, w1b, b1r, w2b, b2r)
    out = jax.block_until_ready(out)

    # Pure-JAX f32 reference of the same forward pass (kernel runs bf16 matmuls
    # with f32 accumulation + approx reciprocal, so use a bf16-level tolerance).
    h_ref = jnp.maximum(x @ w1 + b1, 0.0)
    o_ref = jax.nn.sigmoid(h_ref @ w2 + b2)
    assert out.shape == (B, D_out)
    assert jnp.allclose(out, o_ref, atol=2e-2, rtol=2e-2), (
        float(jnp.max(jnp.abs(out - o_ref))))

    # TODO(synk): the PyTorch `learn()` (loss/backward/optimizer step) is training
    # machinery, not part of the forward pass, and is not implemented here.
    print("KERNEL_OK")
</pallas_src>

<mosaic_0001>
module attributes {stable_mosaic.version = 11 : i64} {
  func.func @mlp_kernel(%arg0: i32, %arg1: memref<512x16xf32, #tpu.memory_space<vmem>>, %arg2: memref<16x32xbf16, #tpu.memory_space<vmem>>, %arg3: memref<1x32xf32, #tpu.memory_space<vmem>>, %arg4: memref<32x8xbf16, #tpu.memory_space<vmem>>, %arg5: memref<1x8xf32, #tpu.memory_space<vmem>>, %arg6: memref<512x8xf32, #tpu.memory_space<vmem>>) attributes {dimension_semantics = [#tpu.dimension_semantics<parallel>], iteration_bounds = array<i64: 1>, scalar_prefetch = 0 : i64, scratch_operands = 0 : i64, tpu.core_type = #tpu.core_type<tc>, window_params = [{transform_indices = @transform_0, window_bounds = array<i64: 512, 16>}, {pipeline_mode = #tpu.pipeline_mode<synchronous>, transform_indices = @transform_1, window_bounds = array<i64: 16, 32>}, {pipeline_mode = #tpu.pipeline_mode<synchronous>, transform_indices = @transform_2, window_bounds = array<i64: 1, 32>}, {pipeline_mode = #tpu.pipeline_mode<synchronous>, transform_indices = @transform_3, window_bounds = array<i64: 32, 8>}, {pipeline_mode = #tpu.pipeline_mode<synchronous>, transform_indices = @transform_4, window_bounds = array<i64: 1, 8>}, {transform_indices = @transform_5, window_bounds = array<i64: 512, 8>}]} {
    %c0 = arith.constant 0 : index
    %c0_0 = arith.constant 0 : index
    %0 = vector.load %arg1[%c0, %c0_0] : memref<512x16xf32, #tpu.memory_space<vmem>>, vector<512x16xf32>
    %1 = arith.truncf %0 : vector<512x16xf32> to vector<512x16xbf16>
    %c0_1 = arith.constant 0 : index
    %c0_2 = arith.constant 0 : index
    %2 = vector.load %arg2[%c0_1, %c0_2] : memref<16x32xbf16, #tpu.memory_space<vmem>>, vector<16x32xbf16>
    %cst = arith.constant dense<0.000000e+00> : vector<512x32xf32>
    %3 = tpu.matmul %1, %2, %cst {dimension_numbers = #tpu.dot_dimension_numbers<[1], [0], [0], [1], [0, 0, 1, 1], [], []>} : vector<512x16xbf16>, vector<16x32xbf16>, vector<512x32xf32> -> vector<512x32xf32>
    %c0_3 = arith.constant 0 : index
    %c0_4 = arith.constant 0 : index
    %4 = vector.load %arg3[%c0_3, %c0_4] : memref<1x32xf32, #tpu.memory_space<vmem>>, vector<1x32xf32>
    %5 = vector.broadcast %4 : vector<1x32xf32> to vector<512x32xf32>
    %6 = arith.addf %3, %5 : vector<512x32xf32>
    %cst_5 = arith.constant 0.000000e+00 : f32
    %7 = vector.broadcast %cst_5 : f32 to vector<512x32xf32>
    %8 = arith.maximumf %6, %7 : vector<512x32xf32>
    %9 = arith.truncf %8 : vector<512x32xf32> to vector<512x32xbf16>
    %c0_6 = arith.constant 0 : index
    %c0_7 = arith.constant 0 : index
    %10 = vector.load %arg4[%c0_6, %c0_7] : memref<32x8xbf16, #tpu.memory_space<vmem>>, vector<32x8xbf16>
    %cst_8 = arith.constant dense<0.000000e+00> : vector<512x8xf32>
    %11 = tpu.matmul %9, %10, %cst_8 {dimension_numbers = #tpu.dot_dimension_numbers<[1], [0], [0], [1], [0, 0, 1, 1], [], []>} : vector<512x32xbf16>, vector<32x8xbf16>, vector<512x8xf32> -> vector<512x8xf32>
    %c0_9 = arith.constant 0 : index
    %c0_10 = arith.constant 0 : index
    %12 = vector.load %arg5[%c0_9, %c0_10] : memref<1x8xf32, #tpu.memory_space<vmem>>, vector<1x8xf32>
    %13 = vector.broadcast %12 : vector<1x8xf32> to vector<512x8xf32>
    %14 = arith.addf %11, %13 : vector<512x8xf32>
    %cst_11 = arith.constant 0.000000e+00 : f32
    %15 = vector.broadcast %cst_11 : f32 to vector<512x8xf32>
    %16 = arith.subf %15, %14 : vector<512x8xf32>
    %17 = math.exp %16 : vector<512x8xf32>
    %cst_12 = arith.constant 1.000000e+00 : f32
    %18 = vector.broadcast %cst_12 : f32 to vector<512x8xf32>
    %19 = arith.addf %18, %17 : vector<512x8xf32>
    %20 = tpu.reciprocal %19 {approx = true} : vector<512x8xf32> -> vector<512x8xf32>
    %c0_13 = arith.constant 0 : index
    %c0_14 = arith.constant 0 : index
    %21 = vector.load %arg6[%c0_13, %c0_14] : memref<512x8xf32, #tpu.memory_space<vmem>>, vector<512x8xf32>
    tpu.vector_store %arg6[%c0_13, %c0_14], %20 {strides = array<i32>} : memref<512x8xf32, #tpu.memory_space<vmem>>, vector<512x8xf32>,
    return
  }
  func.func @transform_0(%arg0: i32) -> (i32, i32) {
    %c0_i32 = arith.constant 0 : i32
    %c0_i32_0 = arith.constant 0 : i32
    return %arg0, %c0_i32 : i32, i32
  }
  func.func @transform_1(%arg0: i32) -> (i32, i32) {
    %c0_i32 = arith.constant 0 : i32
    %c0_i32_0 = arith.constant 0 : i32
    %c0_i32_1 = arith.constant 0 : i32
    return %c0_i32, %c0_i32_0 : i32, i32
  }
  func.func @transform_2(%arg0: i32) -> (i32, i32) {
    %c0_i32 = arith.constant 0 : i32
    %c0_i32_0 = arith.constant 0 : i32
    %c0_i32_1 = arith.constant 0 : i32
    return %c0_i32, %c0_i32_0 : i32, i32
  }
  func.func @transform_3(%arg0: i32) -> (i32, i32) {
    %c0_i32 = arith.constant 0 : i32
    %c0_i32_0 = arith.constant 0 : i32
    %c0_i32_1 = arith.constant 0 : i32
    return %c0_i32, %c0_i32_0 : i32, i32
  }
  func.func @transform_4(%arg0: i32) -> (i32, i32) {
    %c0_i32 = arith.constant 0 : i32
    %c0_i32_0 = arith.constant 0 : i32
    %c0_i32_1 = arith.constant 0 : i32
    return %c0_i32, %c0_i32_0 : i32, i32
  }
  func.func @transform_5(%arg0: i32) -> (i32, i32) {
    %c0_i32 = arith.constant 0 : i32
    %c0_i32_0 = arith.constant 0 : i32
    return %arg0, %c0_i32 : i32, i32
  }
}

</mosaic_0001>

<llo_original>
// kernel: mlp_forward.1
$region0: #{mlp_forward.1}
  #allocation0 [shape = 'u32[]', space=smem, size = 0x4, offset = 0x4, fixed_abs, tag = 'smem constant byte address 0x4 - core index']
  #allocation1 [shape = 'u32[144,128]{1,0:T(1,128)}', space=vmem, size = 0x12000, scoped, tag = 'internal scratch']
  %s0 = inlined_call_operand.vmem [shape: f32[512,16], index: 0, kind: input, shape index: {}]
  %s1 = inlined_call_operand.vmem [shape: bf16[16,32], index: 1, kind: input, shape index: {}]
  %s2 = inlined_call_operand.vmem [shape: f32[1,32], index: 2, kind: input, shape index: {}]
  %s3 = inlined_call_operand.vmem [shape: bf16[32,8], index: 3, kind: input, shape index: {}]
  %s4 = inlined_call_operand.vmem [shape: f32[1,8], index: 4, kind: input, shape index: {}]
  %s5 = inlined_call_operand.vmem [shape: f32[512,8], index: 5, kind: output, shape index: {}]
  %s6 = sld [smem:[#allocation0]]
  $region30: #{mlp_forward.1} parent=0
    _
  %s8 = ssub.s32 1, %s6
  %s9 = scalar_select 0, %s8, %s6
  // Predicated region
  $region2: #{mlp_forward.1} parent=0 // pred_check
    _
  $region3: #{mlp_forward.1} parent=0 // pred_check_branch
    %11 = sbr.rel (0) target = $region5
  $region4: #{mlp_forward.1} parent=0 // pred_region
    _
  $region5: #{mlp_forward.1} parent=0 // pred_fallthru
    _
  // Predicated region
  $region6: #{mlp_forward.1} parent=0 // pred_check
    _
  $region7: #{mlp_forward.1} parent=0 // pred_check_branch
    %13 = sbr.rel (0) target = $region9
  $region8: #{mlp_forward.1} parent=0 // pred_region
    _
  $region9: #{mlp_forward.1} parent=0 // pred_fallthru
    _
  // Predicated region
  $region10: #{mlp_forward.1} parent=0 // pred_check
    _
  $region11: #{mlp_forward.1} parent=0 // pred_check_branch
    %15 = sbr.rel (0) target = $region13
  $region12: #{mlp_forward.1} parent=0 // pred_region
    _
  $region13: #{mlp_forward.1} parent=0 // pred_fallthru
    _
  // Predicated region
  $region14: #{mlp_forward.1} parent=0 // pred_check
    _
  $region15: #{mlp_forward.1} parent=0 // pred_check_branch
    %17 = sbr.rel (0) target = $region17
  $region16: #{mlp_forward.1} parent=0 // pred_region
    _
  $region17: #{mlp_forward.1} parent=0 // pred_fallthru
    _
  // Predicated region
  $region18: #{mlp_forward.1} parent=0 // pred_check
    _
  $region19: #{mlp_forward.1} parent=0 // pred_check_branch
    %19 = sbr.rel (0) target = $region21
  $region20: #{mlp_forward.1} parent=0 // pred_region
    _
  $region21: #{mlp_forward.1} parent=0 // pred_fallthru
    _
  %v21 = vld [vmem:[%s0] sm:$0xff]
  %v22 = vld [vmem:[%s0 + $0x8] sm:$0xff]
  %v23 = vld [vmem:[%s0 + $0x10] sm:$0xff]
  %v24 = vld [vmem:[%s0 + $0x18] sm:$0xff]
  %v25 = vld [vmem:[%s0 + $0x20] sm:$0xff]
  %v26 = vld [vmem:[%s0 + $0x28] sm:$0xff]
  %v27 = vld [vmem:[%s0 + $0x30] sm:$0xff]
  %v28 = vld [vmem:[%s0 + $0x38] sm:$0xff]
  %v29 = vld [vmem:[%s0 + $0x40] sm:$0xff]
  %v30 = vld [vmem:[%s0 + $0x48] sm:$0xff]
  %v31 = vld [vmem:[%s0 + $0x50] sm:$0xff]
  %v32 = vld [vmem:[%s0 + $0x58] sm:$0xff]
  %v33 = vld [vmem:[%s0 + $0x60] sm:$0xff]
  %v34 = vld [vmem:[%s0 + $0x68] sm:$0xff]
  %v35 = vld [vmem:[%s0 + $0x70] sm:$0xff]
  %v36 = vld [vmem:[%s0 + $0x78] sm:$0xff]
  %v37 = vld [vmem:[%s0 + $0x80] sm:$0xff]
  %v38 = vld [vmem:[%s0 + $0x88] sm:$0xff]
  %v39 = vld [vmem:[%s0 + $0x90] sm:$0xff]
  %v40 = vld [vmem:[%s0 + $0x98] sm:$0xff]
  %v41 = vld [vmem:[%s0 + $0xa0] sm:$0xff]
  %v42 = vld [vmem:[%s0 + $0xa8] sm:$0xff]
  %v43 = vld [vmem:[%s0 + $0xb0] sm:$0xff]
  %v44 = vld [vmem:[%s0 + $0xb8] sm:$0xff]
  %v45 = vld [vmem:[%s0 + $0xc0] sm:$0xff]
  %v46 = vld [vmem:[%s0 + $0xc8] sm:$0xff]
  %v47 = vld [vmem:[%s0 + $0xd0] sm:$0xff]
  %v48 = vld [vmem:[%s0 + $0xd8] sm:$0xff]
  %v49 = vld [vmem:[%s0 + $0xe0] sm:$0xff]
  %v50 = vld [vmem:[%s0 + $0xe8] sm:$0xff]
  %v51 = vld [vmem:[%s0 + $0xf0] sm:$0xff]
  %v52 = vld [vmem:[%s0 + $0xf8] sm:$0xff]
  %v53 = vld [vmem:[%s0 + $0x100] sm:$0xff]
  %v54 = vld [vmem:[%s0 + $0x108] sm:$0xff]
  %v55 = vld [vmem:[%s0 + $0x110] sm:$0xff]
  %v56 = vld [vmem:[%s0 + $0x118] sm:$0xff]
  %v57 = vld [vmem:[%s0 + $0x120] sm:$0xff]
  %v58 = vld [vmem:[%s0 + $0x128] sm:$0xff]
  %v59 = vld [vmem:[%s0 + $0x130] sm:$0xff]
  %v60 = vld [vmem:[%s0 + $0x138] sm:$0xff]
  %v61 = vld [vmem:[%s0 + $0x140] sm:$0xff]
  %v62 = vld [vmem:[%s0 + $0x148] sm:$0xff]
  %v63 = vld [vmem:[%s0 + $0x150] sm:$0xff]
  %v64 = vld [vmem:[%s0 + $0x158] sm:$0xff]
  %v65 = vld [vmem:[%s0 + $0x160] sm:$0xff]
  %v66 = vld [vmem:[%s0 + $0x168] sm:$0xff]
  %v67 = vld [vmem:[%s0 + $0x170] sm:$0xff]
  %v68 = vld [vmem:[%s0 + $0x178] sm:$0xff]
  %v69 = vld [vmem:[%s0 + $0x180] sm:$0xff]
  %v70 = vld [vmem:[%s0 + $0x188] sm:$0xff]
  %v71 = vld [vmem:[%s0 + $0x190] sm:$0xff]
  %v72 = vld [vmem:[%s0 + $0x198] sm:$0xff]
  %v73 = vld [vmem:[%s0 + $0x1a0] sm:$0xff]
  %v74 = vld [vmem:[%s0 + $0x1a8] sm:$0xff]
  %v75 = vld [vmem:[%s0 + $0x1b0] sm:$0xff]
  %v76 = vld [vmem:[%s0 + $0x1b8] sm:$0xff]
  %v77 = vld [vmem:[%s0 + $0x1c0] sm:$0xff]
  %v78 = vld [vmem:[%s0 + $0x1c8] sm:$0xff]
  %v79 = vld [vmem:[%s0 + $0x1d0] sm:$0xff]
  %v80 = vld [vmem:[%s0 + $0x1d8] sm:$0xff]
  %v81 = vld [vmem:[%s0 + $0x1e0] sm:$0xff]
  %v82 = vld [vmem:[%s0 + $0x1e8] sm:$0xff]
  %v83 = vld [vmem:[%s0 + $0x1f0] sm:$0xff]
  %v84 = vld [vmem:[%s0 + $0x1f8] sm:$0xff]
  %v85 = vpack.c.bf16 %v22, %v21
  %v86 = vpack.c.bf16 %v24, %v23
  %v87 = vpack.c.bf16 %v26, %v25
  %v88 = vpack.c.bf16 %v28, %v27
  %v89 = vpack.c.bf16 %v30, %v29
  %v90 = vpack.c.bf16 %v32, %v31
  %v91 = vpack.c.bf16 %v34, %v33
  %v92 = vpack.c.bf16 %v36, %v35
  %v93 = vpack.c.bf16 %v38, %v37
  %v94 = vpack.c.bf16 %v40, %v39
  %v95 = vpack.c.bf16 %v42, %v41
  %v96 = vpack.c.bf16 %v44, %v43
  %v97 = vpack.c.bf16 %v46, %v45
  %v98 = vpack.c.bf16 %v48, %v47
  %v99 = vpack.c.bf16 %v50, %v49
  %v100 = vpack.c.bf16 %v52, %v51
  %v101 = vpack.c.bf16 %v54, %v53
  %v102 = vpack.c.bf16 %v56, %v55
  %v103 = vpack.c.bf16 %v58, %v57
  %v104 = vpack.c.bf16 %v60, %v59
  %v105 = vpack.c.bf16 %v62, %v61
  %v106 = vpack.c.bf16 %v64, %v63
  %v107 = vpack.c.bf16 %v66, %v65
  %v108 = vpack.c.bf16 %v68, %v67
  %v109 = vpack.c.bf16 %v70, %v69
  %v110 = vpack.c.bf16 %v72, %v71
  %v111 = vpack.c.bf16 %v74, %v73
  %v112 = vpack.c.bf16 %v76, %v75
  %v113 = vpack.c.bf16 %v78, %v77
  %v114 = vpack.c.bf16 %v80, %v79
  %v115 = vpack.c.bf16 %v82, %v81
  %v116 = vpack.c.bf16 %v84, %v83
  %v117 = vld [vmem:[%s1] sm:$0xf]
  %v118 = vld [vmem:[%s1 + $0x4] sm:$0xf]
  %v119 = vld [vmem:[%s2] sm:$0x1]
  %v121 = vlaneseq
  %v122 = vshrl.u32 %v121, 7
  %v123 = vsub.s32 0, %v122
  %v124 = vrot.slane %v119, %v123
  %v128 = vunpack.c.l.b16 %v117
  %v129 = vunpack.c.l.b16 %v118
  %v130 = vpack.c.b16 %v129, %v128
  %vm132 = vcmask 130048
  %v134 = vsel %vm132, %v85, 0
  %v137 = vsel %vm132, %v86, 0
  %v140 = vsel %vm132, %v87, 0
  %v143 = vsel %vm132, %v88, 0
  %v146 = vsel %vm132, %v89, 0
  %v149 = vsel %vm132, %v90, 0
  %v152 = vsel %vm132, %v91, 0
  %v155 = vsel %vm132, %v92, 0
  %v158 = vsel %vm132, %v93, 0
  %v161 = vsel %vm132, %v94, 0
  %v164 = vsel %vm132, %v95, 0
  %v167 = vsel %vm132, %v96, 0
  %v170 = vsel %vm132, %v97, 0
  %v173 = vsel %vm132, %v98, 0
  %v176 = vsel %vm132, %v99, 0
  %v179 = vsel %vm132, %v100, 0
  %v182 = vsel %vm132, %v101, 0
  %v185 = vsel %vm132, %v102, 0
  %v188 = vsel %vm132, %v103, 0
  %v191 = vsel %vm132, %v104, 0
  %v194 = vsel %vm132, %v105, 0
  %v197 = vsel %vm132, %v106, 0
  %v200 = vsel %vm132, %v107, 0
  %v203 = vsel %vm132, %v108, 0
  %v206 = vsel %vm132, %v109, 0
  %v209 = vsel %vm132, %v110, 0
  %v212 = vsel %vm132, %v111, 0
  %v215 = vsel %vm132, %v112, 0
  %v218 = vsel %vm132, %v113, 0
  %v221 = vsel %vm132, %v114, 0
  %v224 = vsel %vm132, %v115, 0
  %v227 = vsel %vm132, %v116, 0
  %229 = vmatprep.subr.bf16.mxu0 0
  %230 = vmatpush1.bf16.msra.mxu0 0
  %231 = vmatprep.subr.bf16.mxu0 0
  %232 = vmatpush1.bf16.msra.mxu0 0
  %233 = vmatprep.subr.bf16.mxu0 0
  %234 = vmatpush1.bf16.msra.mxu0 0
  %235 = vmatprep.subr.bf16.mxu0 0
  %236 = vmatpush1.bf16.msra.mxu0 0
  %237 = vmatprep.subr.bf16.mxu0 0
  %238 = vmatpush1.bf16.msra.mxu0 0
  %239 = vmatprep.subr.bf16.mxu0 0
  %240 = vmatpush1.bf16.msra.mxu0 0
  %241 = vmatprep.subr.bf16.mxu0 0
  %242 = vmatpush1.bf16.msra.mxu0 0
  %243 = vmatprep.subr.bf16.mxu0 0
  %244 = vmatpush1.bf16.msra.mxu0 %v130
  %245 = vmatprep.subr.bf16.mxu0 0
  %246 = vmatpush2.bf16.msra.mxu0 0
  %247 = vmatprep.subr.bf16.mxu0 0
  %248 = vmatpush2.bf16.msra.mxu0 0
  %249 = vmatprep.subr.bf16.mxu0 0
  %250 = vmatpush2.bf16.msra.mxu0 0
  %251 = vmatprep.subr.bf16.mxu0 0
  %252 = vmatpush2.bf16.msra.mxu0 0
  %253 = vmatprep.subr.bf16.mxu0 0
  %254 = vmatpush2.bf16.msra.mxu0 0
  %255 = vmatprep.subr.bf16.mxu0 0
  %256 = vmatpush2.bf16.msra.mxu0 0
  %257 = vmatprep.subr.bf16.mxu0 0
  %258 = vmatpush2.bf16.msra.mxu0 0
  %259 = vmatprep.subr.bf16.mxu0 0
  %260 = vmatpush2.bf16.msra.mxu0 0
  %261 = vmatprep.mubr.bf16.mxu0 0
  %262 = vmatmul.mubr.bf16.gmra.mxu0 %v134
  %v263 = vpop.f32.mrf.mxu0
  %v264 = vadd.f32 %v124, %v263
  %v265 = vpop.f32.mrf.mxu0
  %v266 = vpop.f32.mrf.mxu0
  %v267 = vadd.f32 %v124, %v266
  %v268 = vpop.f32.mrf.mxu0
  %269 = vmatprep.mubr.bf16.mxu0 0
  %270 = vmatmul.mubr.bf16.gmra.mxu0 %v137
  %v271 = vpop.f32.mrf.mxu0
  %v272 = vadd.f32 %v124, %v271
  %v273 = vpop.f32.mrf.mxu0
  %v274 = vpop.f32.mrf.mxu0
  %v275 = vadd.f32 %v124, %v274
  %v276 = vpop.f32.mrf.mxu0
  %277 = vmatprep.mubr.bf16.mxu0 0
  %278 = vmatmul.mubr.bf16.gmra.mxu0 %v140
  %v279 = vpop.f32.mrf.mxu0
  %v280 = vadd.f32 %v124, %v279
  %v281 = vpop.f32.mrf.mxu0
  %v282 = vpop.f32.mrf.mxu0
  %v283 = vadd.f32 %v124, %v282
  %v284 = vpop.f32.mrf.mxu0
  %285 = vmatprep.mubr.bf16.mxu0 0
  %286 = vmatmul.mubr.bf16.gmra.mxu0 %v143
  %v287 = vpop.f32.mrf.mxu0
  %v288 = vadd.f32 %v124, %v287
  %v289 = vpop.f32.mrf.mxu0
  %v290 = vpop.f32.mrf.mxu0
  %v291 = vadd.f32 %v124, %v290
  %v292 = vpop.f32.mrf.mxu0
  %293 = vmatprep.mubr.bf16.mxu0 0
  %294 = vmatmul.mubr.bf16.gmra.mxu0 %v146
  %v295 = vpop.f32.mrf.mxu0
  %v296 = vadd.f32 %v124, %v295
  %v297 = vpop.f32.mrf.mxu0
  %v298 = vpop.f32.mrf.mxu0
  %v299 = vadd.f32 %v124, %v298
  %v300 = vpop.f32.mrf.mxu0
  %301 = vmatprep.mubr.bf16.mxu0 0
  %302 = vmatmul.mubr.bf16.gmra.mxu0 %v149
  %v303 = vpop.f32.mrf.mxu0
  %v304 = vadd.f32 %v124, %v303
  %v305 = vpop.f32.mrf.mxu0
  %v306 = vpop.f32.mrf.mxu0
  %v307 = vadd.f32 %v124, %v306
  %v308 = vpop.f32.mrf.mxu0
  %309 = vmatprep.mubr.bf16.mxu0 0
  %310 = vmatmul.mubr.bf16.gmra.mxu0 %v152
  %v311 = vpop.f32.mrf.mxu0
  %v312 = vadd.f32 %v124, %v311
  %v313 = vpop.f32.mrf.mxu0
  %v314 = vpop.f32.mrf.mxu0
  %v315 = vadd.f32 %v124, %v314
  %v316 = vpop.f32.mrf.mxu0
  %317 = vmatprep.mubr.bf16.mxu0 0
  %318 = vmatmul.mubr.bf16.gmra.mxu0 %v155
  %v319 = vpop.f32.mrf.mxu0
  %v320 = vadd.f32 %v124, %v319
  %v321 = vpop.f32.mrf.mxu0
  %v322 = vpop.f32.mrf.mxu0
  %v323 = vadd.f32 %v124, %v322
  %v324 = vpop.f32.mrf.mxu0
  %325 = vmatprep.mubr.bf16.mxu0 0
  %326 = vmatmul.mubr.bf16.gmra.mxu0 %v158
  %v327 = vpop.f32.mrf.mxu0
  %v328 = vadd.f32 %v124, %v327
  %v329 = vpop.f32.mrf.mxu0
  %v330 = vpop.f32.mrf.mxu0
  %v331 = vadd.f32 %v124, %v330
  %v332 = vpop.f32.mrf.mxu0
  %333 = vmatprep.mubr.bf16.mxu0 0
  %334 = vmatmul.mubr.bf16.gmra.mxu0 %v161
  %v335 = vpop.f32.mrf.mxu0
  %v336 = vadd.f32 %v124, %v335
  %v337 = vpop.f32.mrf.mxu0
  %v338 = vpop.f32.mrf.mxu0
  %v339 = vadd.f32 %v124, %v338
  %v340 = vpop.f32.mrf.mxu0
  %341 = vmatprep.mubr.bf16.mxu0 0
  %342 = vmatmul.mubr.bf16.gmra.mxu0 %v164
  %v343 = vpop.f32.mrf.mxu0
  %v344 = vadd.f32 %v124, %v343
  %v345 = vpop.f32.mrf.mxu0
  %v346 = vpop.f32.mrf.mxu0
  %v347 = vadd.f32 %v124, %v346
  %v348 = vpop.f32.mrf.mxu0
  %349 = vmatprep.mubr.bf16.mxu0 0
  %350 = vmatmul.mubr.bf16.gmra.mxu0 %v167
  %v351 = vpop.f32.mrf.mxu0
  %v352 = vadd.f32 %v124, %v351
  %v353 = vpop.f32.mrf.mxu0
  %v354 = vpop.f32.mrf.mxu0
  %v355 = vadd.f32 %v124, %v354
  %v356 = vpop.f32.mrf.mxu0
  %357 = vmatprep.mubr.bf16.mxu0 0
  %358 = vmatmul.mubr.bf16.gmra.mxu0 %v170
  %v359 = vpop.f32.mrf.mxu0
  %v360 = vadd.f32 %v124, %v359
  %v361 = vpop.f32.mrf.mxu0
  %v362 = vpop.f32.mrf.mxu0
  %v363 = vadd.f32 %v124, %v362
  %v364 = vpop.f32.mrf.mxu0
  %365 = vmatprep.mubr.bf16.mxu0 0
  %366 = vmatmul.mubr.bf16.gmra.mxu0 %v173
  %v367 = vpop.f32.mrf.mxu0
  %v368 = vadd.f32 %v124, %v367
  %v369 = vpop.f32.mrf.mxu0
  %v370 = vpop.f32.mrf.mxu0
  %v371 = vadd.f32 %v124, %v370
  %v372 = vpop.f32.mrf.mxu0
  %373 = vmatprep.mubr.bf16.mxu0 0
  %374 = vmatmul.mubr.bf16.gmra.mxu0 %v176
  %v375 = vpop.f32.mrf.mxu0
  %v376 = vadd.f32 %v124, %v375
  %v377 = vpop.f32.mrf.mxu0
  %v378 = vpop.f32.mrf.mxu0
  %v379 = vadd.f32 %v124, %v378
  %v380 = vpop.f32.mrf.mxu0
  %381 = vmatprep.mubr.bf16.mxu0 0
  %382 = vmatmul.mubr.bf16.gmra.mxu0 %v179
  %v383 = vpop.f32.mrf.mxu0
  %v384 = vadd.f32 %v124, %v383
  %v385 = vpop.f32.mrf.mxu0
  %v386 = vpop.f32.mrf.mxu0
  %v387 = vadd.f32 %v124, %v386
  %v388 = vpop.f32.mrf.mxu0
  %389 = vmatprep.mubr.bf16.mxu0 0
  %390 = vmatmul.mubr.bf16.gmra.mxu0 %v182
  %v391 = vpop.f32.mrf.mxu0
  %v392 = vadd.f32 %v124, %v391
  %v393 = vpop.f32.mrf.mxu0
  %v394 = vpop.f32.mrf.mxu0
  %v395 = vadd.f32 %v124, %v394
  %v396 = vpop.f32.mrf.mxu0
  %397 = vmatprep.mubr.bf16.mxu0 0
  %398 = vmatmul.mubr.bf16.gmra.mxu0 %v185
  %v399 = vpop.f32.mrf.mxu0
  %v400 = vadd.f32 %v124, %v399
  %v401 = vpop.f32.mrf.mxu0
  %v402 = vpop.f32.mrf.mxu0
  %v403 = vadd.f32 %v124, %v402
  %v404 = vpop.f32.mrf.mxu0
  %405 = vmatprep.mubr.bf16.mxu0 0
  %406 = vmatmul.mubr.bf16.gmra.mxu0 %v188
  %v407 = vpop.f32.mrf.mxu0
  %v408 = vadd.f32 %v124, %v407
  %v409 = vpop.f32.mrf.mxu0
  %v410 = vpop.f32.mrf.mxu0
  %v411 = vadd.f32 %v124, %v410
  %v412 = vpop.f32.mrf.mxu0
  %413 = vmatprep.mubr.bf16.mxu0 0
  %414 = vmatmul.mubr.bf16.gmra.mxu0 %v191
  %v415 = vpop.f32.mrf.mxu0
  %v416 = vadd.f32 %v124, %v415
  %v417 = vpop.f32.mrf.mxu0
  %v418 = vpop.f32.mrf.mxu0
  %v419 = vadd.f32 %v124, %v418
  %v420 = vpop.f32.mrf.mxu0
  %421 = vmatprep.mubr.bf16.mxu0 0
  %422 = vmatmul.mubr.bf16.gmra.mxu0 %v194
  %v423 = vpop.f32.mrf.mxu0
  %v424 = vadd.f32 %v124, %v423
  %v425 = vpop.f32.mrf.mxu0
  %v426 = vpop.f32.mrf.mxu0
  %v427 = vadd.f32 %v124, %v426
  %v428 = vpop.f32.mrf.mxu0
  %429 = vmatprep.mubr.bf16.mxu0 0
  %430 = vmatmul.mubr.bf16.gmra.mxu0 %v197
  %v431 = vpop.f32.mrf.mxu0
  %v432 = vadd.f32 %v124, %v431
  %v433 = vpop.f32.mrf.mxu0
  %v434 = vpop.f32.mrf.mxu0
  %v435 = vadd.f32 %v124, %v434
  %v436 = vpop.f32.mrf.mxu0
  %437 = vmatprep.mubr.bf16.mxu0 0
  %438 = vmatmul.mubr.bf16.gmra.mxu0 %v200
  %v439 = vpop.f32.mrf.mxu0
  %v440 = vadd.f32 %v124, %v439
  %v441 = vpop.f32.mrf.mxu0
  %v442 = vpop.f32.mrf.mxu0
  %v443 = vadd.f32 %v124, %v442
  %v444 = vpop.f32.mrf.mxu0
  %445 = vmatprep.mubr.bf16.mxu0 0
  %446 = vmatmul.mubr.bf16.gmra.mxu0 %v203
  %v447 = vpop.f32.mrf.mxu0
  %v448 = vadd.f32 %v124, %v447
  %v449 = vpop.f32.mrf.mxu0
  %v450 = vpop.f32.mrf.mxu0
  %v451 = vadd.f32 %v124, %v450
  %v452 = vpop.f32.mrf.mxu0
  %453 = vmatprep.mubr.bf16.mxu0 0
  %454 = vmatmul.mubr.bf16.gmra.mxu0 %v206
  %v455 = vpop.f32.mrf.mxu0
  %v456 = vadd.f32 %v124, %v455
  %v457 = vpop.f32.mrf.mxu0
  %v458 = vpop.f32.mrf.mxu0
  %v459 = vadd.f32 %v124, %v458
  %v460 = vpop.f32.mrf.mxu0
  %461 = vmatprep.mubr.bf16.mxu0 0
  %462 = vmatmul.mubr.bf16.gmra.mxu0 %v209
  %v463 = vpop.f32.mrf.mxu0
  %v464 = vadd.f32 %v124, %v463
  %v465 = vpop.f32.mrf.mxu0
  %v466 = vpop.f32.mrf.mxu0
  %v467 = vadd.f32 %v124, %v466
  %v468 = vpop.f32.mrf.mxu0
  %469 = vmatprep.mubr.bf16.mxu0 0
  %470 = vmatmul.mubr.bf16.gmra.mxu0 %v212
  %v471 = vpop.f32.mrf.mxu0
  %v472 = vadd.f32 %v124, %v471
  %v473 = vpop.f32.mrf.mxu0
  %v474 = vpop.f32.mrf.mxu0
  %v475 = vadd.f32 %v124, %v474
  %v476 = vpop.f32.mrf.mxu0
  %477 = vmatprep.mubr.bf16.mxu0 0
  %478 = vmatmul.mubr.bf16.gmra.mxu0 %v215
  %v479 = vpop.f32.mrf.mxu0
  %v480 = vadd.f32 %v124, %v479
  %v481 = vpop.f32.mrf.mxu0
  %v482 = vpop.f32.mrf.mxu0
  %v483 = vadd.f32 %v124, %v482
  %v484 = vpop.f32.mrf.mxu0
  %485 = vmatprep.mubr.bf16.mxu0 0
  %486 = vmatmul.mubr.bf16.gmra.mxu0 %v218
  %v487 = vpop.f32.mrf.mxu0
  %v488 = vadd.f32 %v124, %v487
  %v489 = vpop.f32.mrf.mxu0
  %v490 = vpop.f32.mrf.mxu0
  %v491 = vadd.f32 %v124, %v490
  %v492 = vpop.f32.mrf.mxu0
  %493 = vmatprep.mubr.bf16.mxu0 0
  %494 = vmatmul.mubr.bf16.gmra.mxu0 %v221
  %v495 = vpop.f32.mrf.mxu0
  %v496 = vadd.f32 %v124, %v495
  %v497 = vpop.f32.mrf.mxu0
  %v498 = vpop.f32.mrf.mxu0
  %v499 = vadd.f32 %v124, %v498
  %v500 = vpop.f32.mrf.mxu0
  %501 = vmatprep.mubr.bf16.mxu0 0
  %502 = vmatmul.mubr.bf16.gmra.mxu0 %v224
  %v503 = vpop.f32.mrf.mxu0
  %v504 = vadd.f32 %v124, %v503
  %v505 = vpop.f32.mrf.mxu0
  %v506 = vpop.f32.mrf.mxu0
  %v507 = vadd.f32 %v124, %v506
  %v508 = vpop.f32.mrf.mxu0
  %509 = vmatprep.mubr.bf16.mxu0 0
  %510 = vmatmul.mubr.bf16.gmra.mxu0 %v227
  %v511 = vpop.f32.mrf.mxu0
  %v512 = vadd.f32 %v124, %v511
  %v513 = vpop.f32.mrf.mxu0
  %v514 = vpop.f32.mrf.mxu0
  %v515 = vadd.f32 %v124, %v514
  %v516 = vpop.f32.mrf.mxu0
  %517 = vdwg.mxu0
  %v518 = vmax.f32 %v264, 0.0
  %v519 = vmax.f32 %v267, 0.0
  %v520 = vmax.f32 %v272, 0.0
  %v521 = vmax.f32 %v275, 0.0
  %v522 = vmax.f32 %v280, 0.0
  %v523 = vmax.f32 %v283, 0.0
  %v524 = vmax.f32 %v288, 0.0
  %v525 = vmax.f32 %v291, 0.0
  %v526 = vmax.f32 %v296, 0.0
  %v527 = vmax.f32 %v299, 0.0
  %v528 = vmax.f32 %v304, 0.0
  %v529 = vmax.f32 %v307, 0.0
  %v530 = vmax.f32 %v312, 0.0
  %v531 = vmax.f32 %v315, 0.0
  %v532 = vmax.f32 %v320, 0.0
  %v533 = vmax.f32 %v323, 0.0
  %v534 = vmax.f32 %v328, 0.0
  %v535 = vmax.f32 %v331, 0.0
  %v536 = vmax.f32 %v336, 0.0
  %v537 = vmax.f32 %v339, 0.0
  %v538 = vmax.f32 %v344, 0.0
  %v539 = vmax.f32 %v347, 0.0
  %v540 = vmax.f32 %v352, 0.0
  %v541 = vmax.f32 %v355, 0.0
  %v542 = vmax.f32 %v360, 0.0
  %v543 = vmax.f32 %v363, 0.0
  %v544 = vmax.f32 %v368, 0.0
  %v545 = vmax.f32 %v371, 0.0
  %v546 = vmax.f32 %v376, 0.0
  %v547 = vmax.f32 %v379, 0.0
  %v548 = vmax.f32 %v384, 0.0
  %v549 = vmax.f32 %v387, 0.0
  %v550 = vmax.f32 %v392, 0.0
  %v551 = vmax.f32 %v395, 0.0
  %v552 = vmax.f32 %v400, 0.0
  %v553 = vmax.f32 %v403, 0.0
  %v554 = vmax.f32 %v408, 0.0
  %v555 = vmax.f32 %v411, 0.0
  %v556 = vmax.f32 %v416, 0.0
  %v557 = vmax.f32 %v419, 0.0
  %v558 = vmax.f32 %v424, 0.0
  %v559 = vmax.f32 %v427, 0.0
  %v560 = vmax.f32 %v432, 0.0
  %v561 = vmax.f32 %v435, 0.0
  %v562 = vmax.f32 %v440, 0.0
  %v563 = vmax.f32 %v443, 0.0
  %v564 = vmax.f32 %v448, 0.0
  %v565 = vmax.f32 %v451, 0.0
  %v566 = vmax.f32 %v456, 0.0
  %v567 = vmax.f32 %v459, 0.0
  %v568 = vmax.f32 %v464, 0.0
  %v569 = vmax.f32 %v467, 0.0
  %v570 = vmax.f32 %v472, 0.0
  %v571 = vmax.f32 %v475, 0.0
  %v572 = vmax.f32 %v480, 0.0
  %v573 = vmax.f32 %v483, 0.0
  %v574 = vmax.f32 %v488, 0.0
  %v575 = vmax.f32 %v491, 0.0
  %v576 = vmax.f32 %v496, 0.0
  %v577 = vmax.f32 %v499, 0.0
  %v578 = vmax.f32 %v504, 0.0
  %v579 = vmax.f32 %v507, 0.0
  %v580 = vmax.f32 %v512, 0.0
  %v581 = vmax.f32 %v515, 0.0
  %v582 = vpack.c.bf16 %v519, %v518
  %v583 = vpack.c.bf16 %v521, %v520
  %v584 = vpack.c.bf16 %v523, %v522
  %v585 = vpack.c.bf16 %v525, %v524
  %v586 = vpack.c.bf16 %v527, %v526
  %v587 = vpack.c.bf16 %v529, %v528
  %v588 = vpack.c.bf16 %v531, %v530
  %v589 = vpack.c.bf16 %v533, %v532
  %v590 = vpack.c.bf16 %v535, %v534
  %v591 = vpack.c.bf16 %v537, %v536
  %v592 = vpack.c.bf16 %v539, %v538
  %v593 = vpack.c.bf16 %v541, %v540
  %v594 = vpack.c.bf16 %v543, %v542
  %v595 = vpack.c.bf16 %v545, %v544
  %v596 = vpack.c.bf16 %v547, %v546
  %v597 = vpack.c.bf16 %v549, %v548
  %v598 = vpack.c.bf16 %v551, %v550
  %v599 = vpack.c.bf16 %v553, %v552
  %v600 = vpack.c.bf16 %v555, %v554
  %v601 = vpack.c.bf16 %v557, %v556
  %v602 = vpack.c.bf16 %v559, %v558
  %v603 = vpack.c.bf16 %v561, %v560
  %v604 = vpack.c.bf16 %v563, %v562
  %v605 = vpack.c.bf16 %v565, %v564
  %v606 = vpack.c.bf16 %v567, %v566
  %v607 = vpack.c.bf16 %v569, %v568
  %v608 = vpack.c.bf16 %v571, %v570
  %v609 = vpack.c.bf16 %v573, %v572
  %v610 = vpack.c.bf16 %v575, %v574
  %v611 = vpack.c.bf16 %v577, %v576
  %v612 = vpack.c.bf16 %v579, %v578
  %v613 = vpack.c.bf16 %v581, %v580
  %v614 = vld [vmem:[%s3] sm:$0xf]
  %v615 = vld [vmem:[%s3 + $0x4] sm:$0xf]
  %v616 = vld [vmem:[%s3 + $0x8] sm:$0xf]
  %v617 = vld [vmem:[%s3 + $0xc] sm:$0xf]
  %v618 = vld [vmem:[%s4] sm:$0x1]
  %v620 = vlaneseq
  %v621 = vshrl.u32 %v620, 7
  %v622 = vsub.s32 0, %v621
  %v623 = vrot.slane %v618, %v622
  %v629 = vunpack.c.l.b16 %v614
  %v630 = vunpack.c.l.b16 %v615
  %v631 = vunpack.c.l.b16 %v616
  %v632 = vunpack.c.l.b16 %v617
  %v633 = vpack.c.b16 %v630, %v629
  %v634 = vpack.c.b16 %v632, %v631
  %vm637 = vcmask 261120
  %v639 = vsel %vm637, %v582, 0
  %v642 = vsel %vm637, %v583, 0
  %v645 = vsel %vm637, %v584, 0
  %v648 = vsel %vm637, %v585, 0
  %v651 = vsel %vm637, %v586, 0
  %v654 = vsel %vm637, %v587, 0
  %v657 = vsel %vm637, %v588, 0
  %v660 = vsel %vm637, %v589, 0
  %v663 = vsel %vm637, %v590, 0
  %v666 = vsel %vm637, %v591, 0
  %v669 = vsel %vm637, %v592, 0
  %v672 = vsel %vm637, %v593, 0
  %v675 = vsel %vm637, %v594, 0
  %v678 = vsel %vm637, %v595, 0
  %v681 = vsel %vm637, %v596, 0
  %v684 = vsel %vm637, %v597, 0
  %v687 = vsel %vm637, %v598, 0
  %v690 = vsel %vm637, %v599, 0
  %v693 = vsel %vm637, %v600, 0
  %v696 = vsel %vm637, %v601, 0
  %v699 = vsel %vm637, %v602, 0
  %v702 = vsel %vm637, %v603, 0
  %v705 = vsel %vm637, %v604, 0
  %v708 = vsel %vm637, %v605, 0
  %v711 = vsel %vm637, %v606, 0
  %v714 = vsel %vm637, %v607, 0
  %v717 = vsel %vm637, %v608, 0
  %v720 = vsel %vm637, %v609, 0
  %v723 = vsel %vm637, %v610, 0
  %v726 = vsel %vm637, %v611, 0
  %v729 = vsel %vm637, %v612, 0
  %v732 = vsel %vm637, %v613, 0
  %734 = vmatprep.subr.bf16.mxu0 0
  %735 = vmatpush1.bf16.msra.mxu0 0
  %736 = vmatprep.subr.bf16.mxu0 0
  %737 = vmatpush1.bf16.msra.mxu0 0
  %738 = vmatprep.subr.bf16.mxu0 0
  %739 = vmatpush1.bf16.msra.mxu0 0
  %740 = vmatprep.subr.bf16.mxu0 0
  %741 = vmatpush1.bf16.msra.mxu0 0
  %742 = vmatprep.subr.bf16.mxu0 0
  %743 = vmatpush1.bf16.msra.mxu0 0
  %744 = vmatprep.subr.bf16.mxu0 0
  %745 = vmatpush1.bf16.msra.mxu0 0
  %746 = vmatprep.subr.bf16.mxu0 0
  %747 = vmatpush1.bf16.msra.mxu0 %v634
  %748 = vmatprep.subr.bf16.mxu0 0
  %749 = vmatpush1.bf16.msra.mxu0 %v633
  %750 = vmatprep.subr.bf16.mxu0 0
  %751 = vmatpush2.bf16.msra.mxu0 0
  %752 = vmatprep.subr.bf16.mxu0 0
  %753 = vmatpush2.bf16.msra.mxu0 0
  %754 = vmatprep.subr.bf16.mxu0 0
  %755 = vmatpush2.bf16.msra.mxu0 0
  %756 = vmatprep.subr.bf16.mxu0 0
  %757 = vmatpush2.bf16.msra.mxu0 0
  %758 = vmatprep.subr.bf16.mxu0 0
  %759 = vmatpush2.bf16.msra.mxu0 0
  %760 = vmatprep.subr.bf16.mxu0 0
  %761 = vmatpush2.bf16.msra.mxu0 0
  %762 = vmatprep.subr.bf16.mxu0 0
  %763 = vmatpush2.bf16.msra.mxu0 0
  %764 = vmatprep.subr.bf16.mxu0 0
  %765 = vmatpush2.bf16.msra.mxu0 0
  %766 = vmatprep.mubr.bf16.mxu0 0
  %767 = vmatmul.mubr.bf16.gmra.mxu0 %v639
  %v768 = vpop.f32.mrf.mxu0
  %v769 = vadd.f32 %v623, %v768
  %v770 = vpop.f32.mrf.mxu0
  %v771 = vpop.f32.mrf.mxu0
  %v772 = vadd.f32 %v623, %v771
  %v773 = vpop.f32.mrf.mxu0
  %774 = vmatprep.mubr.bf16.mxu0 0
  %775 = vmatmul.mubr.bf16.gmra.mxu0 %v642
  %v776 = vpop.f32.mrf.mxu0
  %v777 = vadd.f32 %v623, %v776
  %v778 = vpop.f32.mrf.mxu0
  %v779 = vpop.f32.mrf.mxu0
  %v780 = vadd.f32 %v623, %v779
  %v781 = vpop.f32.mrf.mxu0
  %782 = vmatprep.mubr.bf16.mxu0 0
  %783 = vmatmul.mubr.bf16.gmra.mxu0 %v645
  %v784 = vpop.f32.mrf.mxu0
  %v785 = vadd.f32 %v623, %v784
  %v786 = vpop.f32.mrf.mxu0
  %v787 = vpop.f32.mrf.mxu0
  %v788 = vadd.f32 %v623, %v787
  %v789 = vpop.f32.mrf.mxu0
  %790 = vmatprep.mubr.bf16.mxu0 0
  %791 = vmatmul.mubr.bf16.gmra.mxu0 %v648
  %v792 = vpop.f32.mrf.mxu0
  %v793 = vadd.f32 %v623, %v792
  %v794 = vpop.f32.mrf.mxu0
  %v795 = vpop.f32.mrf.mxu0
  %v796 = vadd.f32 %v623, %v795
  %v797 = vpop.f32.mrf.mxu0
  %798 = vmatprep.mubr.bf16.mxu0 0
  %799 = vmatmul.mubr.bf16.gmra.mxu0 %v651
  %v800 = vpop.f32.mrf.mxu0
  %v801 = vadd.f32 %v623, %v800
  %v802 = vpop.f32.mrf.mxu0
  %v803 = vpop.f32.mrf.mxu0
  %v804 = vadd.f32 %v623, %v803
  %v805 = vpop.f32.mrf.mxu0
  %806 = vmatprep.mubr.bf16.mxu0 0
  %807 = vmatmul.mubr.bf16.gmra.mxu0 %v654
  %v808 = vpop.f32.mrf.mxu0
  %v809 = vadd.f32 %v623, %v808
  %v810 = vpop.f32.mrf.mxu0
  %v811 = vpop.f32.mrf.mxu0
  %v812 = vadd.f32 %v623, %v811
  %v813 = vpop.f32.mrf.mxu0
  %814 = vmatprep.mubr.bf16.mxu0 0
  %815 = vmatmul.mubr.bf16.gmra.mxu0 %v657
  %v816 = vpop.f32.mrf.mxu0
  %v817 = vadd.f32 %v623, %v816
  %v818 = vpop.f32.mrf.mxu0
  %v819 = vpop.f32.mrf.mxu0
  %v820 = vadd.f32 %v623, %v819
  %v821 = vpop.f32.mrf.mxu0
  %822 = vmatprep.mubr.bf16.mxu0 0
  %823 = vmatmul.mubr.bf16.gmra.mxu0 %v660
  %v824 = vpop.f32.mrf.mxu0
  %v825 = vadd.f32 %v623, %v824
  %v826 = vpop.f32.mrf.mxu0
  %v827 = vpop.f32.mrf.mxu0
  %v828 = vadd.f32 %v623, %v827
  %v829 = vpop.f32.mrf.mxu0
  %830 = vmatprep.mubr.bf16.mxu0 0
  %831 = vmatmul.mubr.bf16.gmra.mxu0 %v663
  %v832 = vpop.f32.mrf.mxu0
  %v833 = vadd.f32 %v623, %v832
  %v834 = vpop.f32.mrf.mxu0
  %v835 = vpop.f32.mrf.mxu0
  %v836 = vadd.f32 %v623, %v835
  %v837 = vpop.f32.mrf.mxu0
  %838 = vmatprep.mubr.bf16.mxu0 0
  %839 = vmatmul.mubr.bf16.gmra.mxu0 %v666
  %v840 = vpop.f32.mrf.mxu0
  %v841 = vadd.f32 %v623, %v840
  %v842 = vpop.f32.mrf.mxu0
  %v843 = vpop.f32.mrf.mxu0
  %v844 = vadd.f32 %v623, %v843
  %v845 = vpop.f32.mrf.mxu0
  %846 = vmatprep.mubr.bf16.mxu0 0
  %847 = vmatmul.mubr.bf16.gmra.mxu0 %v669
  %v848 = vpop.f32.mrf.mxu0
  %v849 = vadd.f32 %v623, %v848
  %v850 = vpop.f32.mrf.mxu0
  %v851 = vpop.f32.mrf.mxu0
  %v852 = vadd.f32 %v623, %v851
  %v853 = vpop.f32.mrf.mxu0
  %854 = vmatprep.mubr.bf16.mxu0 0
  %855 = vmatmul.mubr.bf16.gmra.mxu0 %v672
  %v856 = vpop.f32.mrf.mxu0
  %v857 = vadd.f32 %v623, %v856
  %v858 = vpop.f32.mrf.mxu0
  %v859 = vpop.f32.mrf.mxu0
  %v860 = vadd.f32 %v623, %v859
  %v861 = vpop.f32.mrf.mxu0
  %862 = vmatprep.mubr.bf16.mxu0 0
  %863 = vmatmul.mubr.bf16.gmra.mxu0 %v675
  %v864 = vpop.f32.mrf.mxu0
  %v865 = vadd.f32 %v623, %v864
  %v866 = vpop.f32.mrf.mxu0
  %v867 = vpop.f32.mrf.mxu0
  %v868 = vadd.f32 %v623, %v867
  %v869 = vpop.f32.mrf.mxu0
  %870 = vmatprep.mubr.bf16.mxu0 0
  %871 = vmatmul.mubr.bf16.gmra.mxu0 %v678
  %v872 = vpop.f32.mrf.mxu0
  %v873 = vadd.f32 %v623, %v872
  %v874 = vpop.f32.mrf.mxu0
  %v875 = vpop.f32.mrf.mxu0
  %v876 = vadd.f32 %v623, %v875
  %v877 = vpop.f32.mrf.mxu0
  %878 = vmatprep.mubr.bf16.mxu0 0
  %879 = vmatmul.mubr.bf16.gmra.mxu0 %v681
  %v880 = vpop.f32.mrf.mxu0
  %v881 = vadd.f32 %v623, %v880
  %v882 = vpop.f32.mrf.mxu0
  %v883 = vpop.f32.mrf.mxu0
  %v884 = vadd.f32 %v623, %v883
  %v885 = vpop.f32.mrf.mxu0
  %886 = vmatprep.mubr.bf16.mxu0 0
  %887 = vmatmul.mubr.bf16.gmra.mxu0 %v684
  %v888 = vpop.f32.mrf.mxu0
  %v889 = vadd.f32 %v623, %v888
  %v890 = vpop.f32.mrf.mxu0
  %v891 = vpop.f32.mrf.mxu0
  %v892 = vadd.f32 %v623, %v891
  %v893 = vpop.f32.mrf.mxu0
  %894 = vmatprep.mubr.bf16.mxu0 0
  %895 = vmatmul.mubr.bf16.gmra.mxu0 %v687
  %v896 = vpop.f32.mrf.mxu0
  %v897 = vadd.f32 %v623, %v896
  %v898 = vpop.f32.mrf.mxu0
  %v899 = vpop.f32.mrf.mxu0
  %v900 = vadd.f32 %v623, %v899
  %v901 = vpop.f32.mrf.mxu0
  %902 = vmatprep.mubr.bf16.mxu0 0
  %903 = vmatmul.mubr.bf16.gmra.mxu0 %v690
  %v904 = vpop.f32.mrf.mxu0
  %v905 = vadd.f32 %v623, %v904
  %v906 = vpop.f32.mrf.mxu0
  %v907 = vpop.f32.mrf.mxu0
  %v908 = vadd.f32 %v623, %v907
  %v909 = vpop.f32.mrf.mxu0
  %910 = vmatprep.mubr.bf16.mxu0 0
  %911 = vmatmul.mubr.bf16.gmra.mxu0 %v693
  %v912 = vpop.f32.mrf.mxu0
  %v913 = vadd.f32 %v623, %v912
  %v914 = vpop.f32.mrf.mxu0
  %v915 = vpop.f32.mrf.mxu0
  %v916 = vadd.f32 %v623, %v915
  %v917 = vpop.f32.mrf.mxu0
  %918 = vmatprep.mubr.bf16.mxu0 0
  %919 = vmatmul.mubr.bf16.gmra.mxu0 %v696
  %v920 = vpop.f32.mrf.mxu0
  %v921 = vadd.f32 %v623, %v920
  %v922 = vpop.f32.mrf.mxu0
  %v923 = vpop.f32.mrf.mxu0
  %v924 = vadd.f32 %v623, %v923
  %v925 = vpop.f32.mrf.mxu0
  %926 = vmatprep.mubr.bf16.mxu0 0
  %927 = vmatmul.mubr.bf16.gmra.mxu0 %v699
  %v928 = vpop.f32.mrf.mxu0
  %v929 = vadd.f32 %v623, %v928
  %v930 = vpop.f32.mrf.mxu0
  %v931 = vpop.f32.mrf.mxu0
  %v932 = vadd.f32 %v623, %v931
  %v933 = vpop.f32.mrf.mxu0
  %934 = vmatprep.mubr.bf16.mxu0 0
  %935 = vmatmul.mubr.bf16.gmra.mxu0 %v702
  %v936 = vpop.f32.mrf.mxu0
  %v937 = vadd.f32 %v623, %v936
  %v938 = vpop.f32.mrf.mxu0
  %v939 = vpop.f32.mrf.mxu0
  %v940 = vadd.f32 %v623, %v939
  %v941 = vpop.f32.mrf.mxu0
  %942 = vmatprep.mubr.bf16.mxu0 0
  %943 = vmatmul.mubr.bf16.gmra.mxu0 %v705
  %v944 = vpop.f32.mrf.mxu0
  %v945 = vadd.f32 %v623, %v944
  %v946 = vpop.f32.mrf.mxu0
  %v947 = vpop.f32.mrf.mxu0
  %v948 = vadd.f32 %v623, %v947
  %v949 = vpop.f32.mrf.mxu0
  %950 = vmatprep.mubr.bf16.mxu0 0
  %951 = vmatmul.mubr.bf16.gmra.mxu0 %v708
  %v952 = vpop.f32.mrf.mxu0
  %v953 = vadd.f32 %v623, %v952
  %v954 = vpop.f32.mrf.mxu0
  %v955 = vpop.f32.mrf.mxu0
  %v956 = vadd.f32 %v623, %v955
  %v957 = vpop.f32.mrf.mxu0
  %958 = vmatprep.mubr.bf16.mxu0 0
  %959 = vmatmul.mubr.bf16.gmra.mxu0 %v711
  %v960 = vpop.f32.mrf.mxu0
  %v961 = vadd.f32 %v623, %v960
  %v962 = vpop.f32.mrf.mxu0
  %v963 = vpop.f32.mrf.mxu0
  %v964 = vadd.f32 %v623, %v963
  %v965 = vpop.f32.mrf.mxu0
  %966 = vmatprep.mubr.bf16.mxu0 0
  %967 = vmatmul.mubr.bf16.gmra.mxu0 %v714
  %v968 = vpop.f32.mrf.mxu0
  %v969 = vadd.f32 %v623, %v968
  %v970 = vpop.f32.mrf.mxu0
  %v971 = vpop.f32.mrf.mxu0
  %v972 = vadd.f32 %v623, %v971
  %v973 = vpop.f32.mrf.mxu0
  %974 = vmatprep.mubr.bf16.mxu0 0
  %975 = vmatmul.mubr.bf16.gmra.mxu0 %v717
  %v976 = vpop.f32.mrf.mxu0
  %v977 = vadd.f32 %v623, %v976
  %v978 = vpop.f32.mrf.mxu0
  %v979 = vpop.f32.mrf.mxu0
  %v980 = vadd.f32 %v623, %v979
  %v981 = vpop.f32.mrf.mxu0
  %982 = vmatprep.mubr.bf16.mxu0 0
  %983 = vmatmul.mubr.bf16.gmra.mxu0 %v720
  %v984 = vpop.f32.mrf.mxu0
  %v985 = vadd.f32 %v623, %v984
  %v986 = vpop.f32.mrf.mxu0
  %v987 = vpop.f32.mrf.mxu0
  %v988 = vadd.f32 %v623, %v987
  %v989 = vpop.f32.mrf.mxu0
  %990 = vmatprep.mubr.bf16.mxu0 0
  %991 = vmatmul.mubr.bf16.gmra.mxu0 %v723
  %v992 = vpop.f32.mrf.mxu0
  %v993 = vadd.f32 %v623, %v992
  %v994 = vpop.f32.mrf.mxu0
  %v995 = vpop.f32.mrf.mxu0
  %v996 = vadd.f32 %v623, %v995
  %v997 = vpop.f32.mrf.mxu0
  %998 = vmatprep.mubr.bf16.mxu0 0
  %999 = vmatmul.mubr.bf16.gmra.mxu0 %v726
  %v1000 = vpop.f32.mrf.mxu0
  %v1001 = vadd.f32 %v623, %v1000
  %v1002 = vpop.f32.mrf.mxu0
  %v1003 = vpop.f32.mrf.mxu0
  %v1004 = vadd.f32 %v623, %v1003
  %v1005 = vpop.f32.mrf.mxu0
  %1006 = vmatprep.mubr.bf16.mxu0 0
  %1007 = vmatmul.mubr.bf16.gmra.mxu0 %v729
  %v1008 = vpop.f32.mrf.mxu0
  %v1009 = vadd.f32 %v623, %v1008
  %v1010 = vpop.f32.mrf.mxu0
  %v1011 = vpop.f32.mrf.mxu0
  %v1012 = vadd.f32 %v623, %v1011
  %v1013 = vpop.f32.mrf.mxu0
  %1014 = vmatprep.mubr.bf16.mxu0 0
  %1015 = vmatmul.mubr.bf16.gmra.mxu0 %v732
  %v1016 = vpop.f32.mrf.mxu0
  %v1017 = vadd.f32 %v623, %v1016
  %v1018 = vpop.f32.mrf.mxu0
  %v1019 = vpop.f32.mrf.mxu0
  %v1020 = vadd.f32 %v623, %v1019
  %v1021 = vpop.f32.mrf.mxu0
  %1022 = vdwg.mxu0
  %v1023 = vsub.f32 0.0, %v769
  %v1024 = vsub.f32 0.0, %v772
  %v1025 = vsub.f32 0.0, %v777
  %v1026 = vsub.f32 0.0, %v780
  %v1027 = vsub.f32 0.0, %v785
  %v1028 = vsub.f32 0.0, %v788
  %v1029 = vsub.f32 0.0, %v793
  %v1030 = vsub.f32 0.0, %v796
  %v1031 = vsub.f32 0.0, %v801
  %v1032 = vsub.f32 0.0, %v804
  %v1033 = vsub.f32 0.0, %v809
  %v1034 = vsub.f32 0.0, %v812
  %v1035 = vsub.f32 0.0, %v817
  %v1036 = vsub.f32 0.0, %v820
  %v1037 = vsub.f32 0.0, %v825
  %v1038 = vsub.f32 0.0, %v828
  %v1039 = vsub.f32 0.0, %v833
  %v1040 = vsub.f32 0.0, %v836
  %v1041 = vsub.f32 0.0, %v841
  %v1042 = vsub.f32 0.0, %v844
  %v1043 = vsub.f32 0.0, %v849
  %v1044 = vsub.f32 0.0, %v852
  %v1045 = vsub.f32 0.0, %v857
  %v1046 = vsub.f32 0.0, %v860
  %v1047 = vsub.f32 0.0, %v865
  %v1048 = vsub.f32 0.0, %v868
  %v1049 = vsub.f32 0.0, %v873
  %v1050 = vsub.f32 0.0, %v876
  %v1051 = vsub.f32 0.0, %v881
  %v1052 = vsub.f32 0.0, %v884
  %v1053 = vsub.f32 0.0, %v889
  %v1054 = vsub.f32 0.0, %v892
  %v1055 = vsub.f32 0.0, %v897
  %v1056 = vsub.f32 0.0, %v900
  %v1057 = vsub.f32 0.0, %v905
  %v1058 = vsub.f32 0.0, %v908
  %v1059 = vsub.f32 0.0, %v913
  %v1060 = vsub.f32 0.0, %v916
  %v1061 = vsub.f32 0.0, %v921
  %v1062 = vsub.f32 0.0, %v924
  %v1063 = vsub.f32 0.0, %v929
  %v1064 = vsub.f32 0.0, %v932
  %v1065 = vsub.f32 0.0, %v937
  %v1066 = vsub.f32 0.0, %v940
  %v1067 = vsub.f32 0.0, %v945
  %v1068 = vsub.f32 0.0, %v948
  %v1069 = vsub.f32 0.0, %v953
  %v1070 = vsub.f32 0.0, %v956
  %v1071 = vsub.f32 0.0, %v961
  %v1072 = vsub.f32 0.0, %v964
  %v1073 = vsub.f32 0.0, %v969
  %v1074 = vsub.f32 0.0, %v972
  %v1075 = vsub.f32 0.0, %v977
  %v1076 = vsub.f32 0.0, %v980
  %v1077 = vsub.f32 0.0, %v985
  %v1078 = vsub.f32 0.0, %v988
  %v1079 = vsub.f32 0.0, %v993
  %v1080 = vsub.f32 0.0, %v996
  %v1081 = vsub.f32 0.0, %v1001
  %v1082 = vsub.f32 0.0, %v1004
  %v1083 = vsub.f32 0.0, %v1009
  %v1084 = vsub.f32 0.0, %v1012
  %v1085 = vsub.f32 0.0, %v1017
  %v1086 = vsub.f32 0.0, %v1020
  %v1087 = vmul.f32 %v1023, 1.442695
  %v1088 = vpow.pop %v1087
  %v1089 = vmul.f32 %v1024, 1.442695
  %v1090 = vpow.pop %v1089
  %v1091 = vmul.f32 %v1025, 1.442695
  %v1092 = vpow.pop %v1091
  %v1093 = vmul.f32 %v1026, 1.442695
  %v1094 = vpow.pop %v1093
  %v1095 = vmul.f32 %v1027, 1.442695
  %v1096 = vpow.pop %v1095
  %v1097 = vmul.f32 %v1028, 1.442695
  %v1098 = vpow.pop %v1097
  %v1099 = vmul.f32 %v1029, 1.442695
  %v1100 = vpow.pop %v1099
  %v1101 = vmul.f32 %v1030, 1.442695
  %v1102 = vpow.pop %v1101
  %v1103 = vmul.f32 %v1031, 1.442695
  %v1104 = vpow.pop %v1103
  %v1105 = vmul.f32 %v1032, 1.442695
  %v1106 = vpow.pop %v1105
  %v1107 = vmul.f32 %v1033, 1.442695
  %v1108 = vpow.pop %v1107
  %v1109 = vmul.f32 %v1034, 1.442695
  %v1110 = vpow.pop %v1109
  %v1111 = vmul.f32 %v1035, 1.442695
  %v1112 = vpow.pop %v1111
  %v1113 = vmul.f32 %v1036, 1.442695
  %v1114 = vpow.pop %v1113
  %v1115 = vmul.f32 %v1037, 1.442695
  %v1116 = vpow.pop %v1115
  %v1117 = vmul.f32 %v1038, 1.442695
  %v1118 = vpow.pop %v1117
  %v1119 = vmul.f32 %v1039, 1.442695
  %v1120 = vpow.pop %v1119
  %v1121 = vmul.f32 %v1040, 1.442695
  %v1122 = vpow.pop %v1121
  %v1123 = vmul.f32 %v1041, 1.442695
  %v1124 = vpow.pop %v1123
  %v1125 = vmul.f32 %v1042, 1.442695
  %v1126 = vpow.pop %v1125
  %v1127 = vmul.f32 %v1043, 1.442695
  %v1128 = vpow.pop %v1127
  %v1129 = vmul.f32 %v1044, 1.442695
  %v1130 = vpow.pop %v1129
  %v1131 = vmul.f32 %v1045, 1.442695
  %v1132 = vpow.pop %v1131
  %v1133 = vmul.f32 %v1046, 1.442695
  %v1134 = vpow.pop %v1133
  %v1135 = vmul.f32 %v1047, 1.442695
  %v1136 = vpow.pop %v1135
  %v1137 = vmul.f32 %v1048, 1.442695
  %v1138 = vpow.pop %v1137
  %v1139 = vmul.f32 %v1049, 1.442695
  %v1140 = vpow.pop %v1139
  %v1141 = vmul.f32 %v1050, 1.442695
  %v1142 = vpow.pop %v1141
  %v1143 = vmul.f32 %v1051, 1.442695
  %v1144 = vpow.pop %v1143
  %v1145 = vmul.f32 %v1052, 1.442695
  %v1146 = vpow.pop %v1145
  %v1147 = vmul.f32 %v1053, 1.442695
  %v1148 = vpow.pop %v1147
  %v1149 = vmul.f32 %v1054, 1.442695
  %v1150 = vpow.pop %v1149
  %v1151 = vmul.f32 %v1055, 1.442695
  %v1152 = vpow.pop %v1151
  %v1153 = vmul.f32 %v1056, 1.442695
  %v1154 = vpow.pop %v1153
  %v1155 = vmul.f32 %v1057, 1.442695
  %v1156 = vpow.pop %v1155
  %v1157 = vmul.f32 %v1058, 1.442695
  %v1158 = vpow.pop %v1157
  %v1159 = vmul.f32 %v1059, 1.442695
  %v1160 = vpow.pop %v1159
  %v1161 = vmul.f32 %v1060, 1.442695
  %v1162 = vpow.pop %v1161
  %v1163 = vmul.f32 %v1061, 1.442695
  %v1164 = vpow.pop %v1163
  %v1165 = vmul.f32 %v1062, 1.442695
  %v1166 = vpow.pop %v1165
  %v1167 = vmul.f32 %v1063, 1.442695
  %v1168 = vpow.pop %v1167
  %v1169 = vmul.f32 %v1064, 1.442695
  %v1170 = vpow.pop %v1169
  %v1171 = vmul.f32 %v1065, 1.442695
  %v1172 = vpow.pop %v1171
  %v1173 = vmul.f32 %v1066, 1.442695
  %v1174 = vpow.pop %v1173
  %v1175 = vmul.f32 %v1067, 1.442695
  %v1176 = vpow.pop %v1175
  %v1177 = vmul.f32 %v1068, 1.442695
  %v1178 = vpow.pop %v1177
  %v1179 = vmul.f32 %v1069, 1.442695
  %v1180 = vpow.pop %v1179
  %v1181 = vmul.f32 %v1070, 1.442695
  %v1182 = vpow.pop %v1181
  %v1183 = vmul.f32 %v1071, 1.442695
  %v1184 = vpow.pop %v1183
  %v1185 = vmul.f32 %v1072, 1.442695
  %v1186 = vpow.pop %v1185
  %v1187 = vmul.f32 %v1073, 1.442695
  %v1188 = vpow.pop %v1187
  %v1189 = vmul.f32 %v1074, 1.442695
  %v1190 = vpow.pop %v1189
  %v1191 = vmul.f32 %v1075, 1.442695
  %v1192 = vpow.pop %v1191
  %v1193 = vmul.f32 %v1076, 1.442695
  %v1194 = vpow.pop %v1193
  %v1195 = vmul.f32 %v1077, 1.442695
  %v1196 = vpow.pop %v1195
  %v1197 = vmul.f32 %v1078, 1.442695
  %v1198 = vpow.pop %v1197
  %v1199 = vmul.f32 %v1079, 1.442695
  %v1200 = vpow.pop %v1199
  %v1201 = vmul.f32 %v1080, 1.442695
  %v1202 = vpow.pop %v1201
  %v1203 = vmul.f32 %v1081, 1.442695
  %v1204 = vpow.pop %v1203
  %v1205 = vmul.f32 %v1082, 1.442695
  %v1206 = vpow.pop %v1205
  %v1207 = vmul.f32 %v1083, 1.442695
  %v1208 = vpow.pop %v1207
  %v1209 = vmul.f32 %v1084, 1.442695
  %v1210 = vpow.pop %v1209
  %v1211 = vmul.f32 %v1085, 1.442695
  %v1212 = vpow.pop %v1211
  %v1213 = vmul.f32 %v1086, 1.442695
  %v1214 = vpow.pop %v1213
  %v1215 = vadd.f32 %v1088, 1.0
  %v1216 = vadd.f32 %v1090, 1.0
  %v1217 = vadd.f32 %v1092, 1.0
  %v1218 = vadd.f32 %v1094, 1.0
  %v1219 = vadd.f32 %v1096, 1.0
  %v1220 = vadd.f32 %v1098, 1.0
  %v1221 = vadd.f32 %v1100, 1.0
  %v1222 = vadd.f32 %v1102, 1.0
  %v1223 = vadd.f32 %v1104, 1.0
  %v1224 = vadd.f32 %v1106, 1.0
  %v1225 = vadd.f32 %v1108, 1.0
  %v1226 = vadd.f32 %v1110, 1.0
  %v1227 = vadd.f32 %v1112, 1.0
  %v1228 = vadd.f32 %v1114, 1.0
  %v1229 = vadd.f32 %v1116, 1.0
  %v1230 = vadd.f32 %v1118, 1.0
  %v1231 = vadd.f32 %v1120, 1.0
  %v1232 = vadd.f32 %v1122, 1.0
  %v1233 = vadd.f32 %v1124, 1.0
  %v1234 = vadd.f32 %v1126, 1.0
  %v1235 = vadd.f32 %v1128, 1.0
  %v1236 = vadd.f32 %v1130, 1.0
  %v1237 = vadd.f32 %v1132, 1.0
  %v1238 = vadd.f32 %v1134, 1.0
  %v1239 = vadd.f32 %v1136, 1.0
  %v1240 = vadd.f32 %v1138, 1.0
  %v1241 = vadd.f32 %v1140, 1.0
  %v1242 = vadd.f32 %v1142, 1.0
  %v1243 = vadd.f32 %v1144, 1.0
  %v1244 = vadd.f32 %v1146, 1.0
  %v1245 = vadd.f32 %v1148, 1.0
  %v1246 = vadd.f32 %v1150, 1.0
  %v1247 = vadd.f32 %v1152, 1.0
  %v1248 = vadd.f32 %v1154, 1.0
  %v1249 = vadd.f32 %v1156, 1.0
  %v1250 = vadd.f32 %v1158, 1.0
  %v1251 = vadd.f32 %v1160, 1.0
  %v1252 = vadd.f32 %v1162, 1.0
  %v1253 = vadd.f32 %v1164, 1.0
  %v1254 = vadd.f32 %v1166, 1.0
  %v1255 = vadd.f32 %v1168, 1.0
  %v1256 = vadd.f32 %v1170, 1.0
  %v1257 = vadd.f32 %v1172, 1.0
  %v1258 = vadd.f32 %v1174, 1.0
  %v1259 = vadd.f32 %v1176, 1.0
  %v1260 = vadd.f32 %v1178, 1.0
  %v1261 = vadd.f32 %v1180, 1.0
  %v1262 = vadd.f32 %v1182, 1.0
  %v1263 = vadd.f32 %v1184, 1.0
  %v1264 = vadd.f32 %v1186, 1.0
  %v1265 = vadd.f32 %v1188, 1.0
  %v1266 = vadd.f32 %v1190, 1.0
  %v1267 = vadd.f32 %v1192, 1.0
  %v1268 = vadd.f32 %v1194, 1.0
  %v1269 = vadd.f32 %v1196, 1.0
  %v1270 = vadd.f32 %v1198, 1.0
  %v1271 = vadd.f32 %v1200, 1.0
  %v1272 = vadd.f32 %v1202, 1.0
  %v1273 = vadd.f32 %v1204, 1.0
  %v1274 = vadd.f32 %v1206, 1.0
  %v1275 = vadd.f32 %v1208, 1.0
  %v1276 = vadd.f32 %v1210, 1.0
  %v1277 = vadd.f32 %v1212, 1.0
  %v1278 = vadd.f32 %v1214, 1.0
  %v1279 = vrcp.pop %v1215
  %v1280 = vrcp.pop %v1216
  %v1281 = vrcp.pop %v1217
  %v1282 = vrcp.pop %v1218
  %v1283 = vrcp.pop %v1219
  %v1284 = vrcp.pop %v1220
  %v1285 = vrcp.pop %v1221
  %v1286 = vrcp.pop %v1222
  %v1287 = vrcp.pop %v1223
  %v1288 = vrcp.pop %v1224
  %v1289 = vrcp.pop %v1225
  %v1290 = vrcp.pop %v1226
  %v1291 = vrcp.pop %v1227
  %v1292 = vrcp.pop %v1228
  %v1293 = vrcp.pop %v1229
  %v1294 = vrcp.pop %v1230
  %v1295 = vrcp.pop %v1231
  %v1296 = vrcp.pop %v1232
  %v1297 = vrcp.pop %v1233
  %v1298 = vrcp.pop %v1234
  %v1299 = vrcp.pop %v1235
  %v1300 = vrcp.pop %v1236
  %v1301 = vrcp.pop %v1237
  %v1302 = vrcp.pop %v1238
  %v1303 = vrcp.pop %v1239
  %v1304 = vrcp.pop %v1240
  %v1305 = vrcp.pop %v1241
  %v1306 = vrcp.pop %v1242
  %v1307 = vrcp.pop %v1243
  %v1308 = vrcp.pop %v1244
  %v1309 = vrcp.pop %v1245
  %v1310 = vrcp.pop %v1246
  %v1311 = vrcp.pop %v1247
  %v1312 = vrcp.pop %v1248
  %v1313 = vrcp.pop %v1249
  %v1314 = vrcp.pop %v1250
  %v1315 = vrcp.pop %v1251
  %v1316 = vrcp.pop %v1252
  %v1317 = vrcp.pop %v1253
  %v1318 = vrcp.pop %v1254
  %v1319 = vrcp.pop %v1255
  %v1320 = vrcp.pop %v1256
  %v1321 = vrcp.pop %v1257
  %v1322 = vrcp.pop %v1258
  %v1323 = vrcp.pop %v1259
  %v1324 = vrcp.pop %v1260
  %v1325 = vrcp.pop %v1261
  %v1326 = vrcp.pop %v1262
  %v1327 = vrcp.pop %v1263
  %v1328 = vrcp.pop %v1264
  %v1329 = vrcp.pop %v1265
  %v1330 = vrcp.pop %v1266
  %v1331 = vrcp.pop %v1267
  %v1332 = vrcp.pop %v1268
  %v1333 = vrcp.pop %v1269
  %v1334 = vrcp.pop %v1270
  %v1335 = vrcp.pop %v1271
  %v1336 = vrcp.pop %v1272
  %v1337 = vrcp.pop %v1273
  %v1338 = vrcp.pop %v1274
  %v1339 = vrcp.pop %v1275
  %v1340 = vrcp.pop %v1276
  %v1341 = vrcp.pop %v1277
  %v1342 = vrcp.pop %v1278
  %vm1343 = vcmask 64512
  %1344 = vst.msk [vmem:[%s5] sm:$0xff] %vm1343, %v1279
  %1345 = vst.msk [vmem:[%s5 + $0x8] sm:$0xff] %vm1343, %v1280
  %1346 = vst.msk [vmem:[%s5 + $0x10] sm:$0xff] %vm1343, %v1281
  %1347 = vst.msk [vmem:[%s5 + $0x18] sm:$0xff] %vm1343, %v1282
  %1348 = vst.msk [vmem:[%s5 + $0x20] sm:$0xff] %vm1343, %v1283
  %1349 = vst.msk [vmem:[%s5 + $0x28] sm:$0xff] %vm1343, %v1284
  %1350 = vst.msk [vmem:[%s5 + $0x30] sm:$0xff] %vm1343, %v1285
  %1351 = vst.msk [vmem:[%s5 + $0x38] sm:$0xff] %vm1343, %v1286
  %1352 = vst.msk [vmem:[%s5 + $0x40] sm:$0xff] %vm1343, %v1287
  %1353 = vst.msk [vmem:[%s5 + $0x48] sm:$0xff] %vm1343, %v1288
  %1354 = vst.msk [vmem:[%s5 + $0x50] sm:$0xff] %vm1343, %v1289
  %1355 = vst.msk [vmem:[%s5 + $0x58] sm:$0xff] %vm1343, %v1290
  %1356 = vst.msk [vmem:[%s5 + $0x60] sm:$0xff] %vm1343, %v1291
  %1357 = vst.msk [vmem:[%s5 + $0x68] sm:$0xff] %vm1343, %v1292
  %1358 = vst.msk [vmem:[%s5 + $0x70] sm:$0xff] %vm1343, %v1293
  %1359 = vst.msk [vmem:[%s5 + $0x78] sm:$0xff] %vm1343, %v1294
  %1360 = vst.msk [vmem:[%s5 + $0x80] sm:$0xff] %vm1343, %v1295
  %1361 = vst.msk [vmem:[%s5 + $0x88] sm:$0xff] %vm1343, %v1296
  %1362 = vst.msk [vmem:[%s5 + $0x90] sm:$0xff] %vm1343, %v1297
  %1363 = vst.msk [vmem:[%s5 + $0x98] sm:$0xff] %vm1343, %v1298
  %1364 = vst.msk [vmem:[%s5 + $0xa0] sm:$0xff] %vm1343, %v1299
  %1365 = vst.msk [vmem:[%s5 + $0xa8] sm:$0xff] %vm1343, %v1300
  %1366 = vst.msk [vmem:[%s5 + $0xb0] sm:$0xff] %vm1343, %v1301
  %1367 = vst.msk [vmem:[%s5 + $0xb8] sm:$0xff] %vm1343, %v1302
  %1368 = vst.msk [vmem:[%s5 + $0xc0] sm:$0xff] %vm1343, %v1303
  %1369 = vst.msk [vmem:[%s5 + $0xc8] sm:$0xff] %vm1343, %v1304
  %1370 = vst.msk [vmem:[%s5 + $0xd0] sm:$0xff] %vm1343, %v1305
  %1371 = vst.msk [vmem:[%s5 + $0xd8] sm:$0xff] %vm1343, %v1306
  %1372 = vst.msk [vmem:[%s5 + $0xe0] sm:$0xff] %vm1343, %v1307
  %1373 = vst.msk [vmem:[%s5 + $0xe8] sm:$0xff] %vm1343, %v1308
  %1374 = vst.msk [vmem:[%s5 + $0xf0] sm:$0xff] %vm1343, %v1309
  %1375 = vst.msk [vmem:[%s5 + $0xf8] sm:$0xff] %vm1343, %v1310
  %1376 = vst.msk [vmem:[%s5 + $0x100] sm:$0xff] %vm1343, %v1311
  %1377 = vst.msk [vmem:[%s5 + $0x108] sm:$0xff] %vm1343, %v1312
  %1378 = vst.msk [vmem:[%s5 + $0x110] sm:$0xff] %vm1343, %v1313
  %1379 = vst.msk [vmem:[%s5 + $0x118] sm:$0xff] %vm1343, %v1314
  %1380 = vst.msk [vmem:[%s5 + $0x120] sm:$0xff] %vm1343, %v1315
  %1381 = vst.msk [vmem:[%s5 + $0x128] sm:$0xff] %vm1343, %v1316
  %1382 = vst.msk [vmem:[%s5 + $0x130] sm:$0xff] %vm1343, %v1317
  %1383 = vst.msk [vmem:[%s5 + $0x138] sm:$0xff] %vm1343, %v1318
  %1384 = vst.msk [vmem:[%s5 + $0x140] sm:$0xff] %vm1343, %v1319
  %1385 = vst.msk [vmem:[%s5 + $0x148] sm:$0xff] %vm1343, %v1320
  %1386 = vst.msk [vmem:[%s5 + $0x150] sm:$0xff] %vm1343, %v1321
  %1387 = vst.msk [vmem:[%s5 + $0x158] sm:$0xff] %vm1343, %v1322
  %1388 = vst.msk [vmem:[%s5 + $0x160] sm:$0xff] %vm1343, %v1323
  %1389 = vst.msk [vmem:[%s5 + $0x168] sm:$0xff] %vm1343, %v1324
  %1390 = vst.msk [vmem:[%s5 + $0x170] sm:$0xff] %vm1343, %v1325
  %1391 = vst.msk [vmem:[%s5 + $0x178] sm:$0xff] %vm1343, %v1326
  %1392 = vst.msk [vmem:[%s5 + $0x180] sm:$0xff] %vm1343, %v1327
  %1393 = vst.msk [vmem:[%s5 + $0x188] sm:$0xff] %vm1343, %v1328
  %1394 = vst.msk [vmem:[%s5 + $0x190] sm:$0xff] %vm1343, %v1329
  %1395 = vst.msk [vmem:[%s5 + $0x198] sm:$0xff] %vm1343, %v1330
  %1396 = vst.msk [vmem:[%s5 + $0x1a0] sm:$0xff] %vm1343, %v1331
  %1397 = vst.msk [vmem:[%s5 + $0x1a8] sm:$0xff] %vm1343, %v1332
  %1398 = vst.msk [vmem:[%s5 + $0x1b0] sm:$0xff] %vm1343, %v1333
  %1399 = vst.msk [vmem:[%s5 + $0x1b8] sm:$0xff] %vm1343, %v1334
  %1400 = vst.msk [vmem:[%s5 + $0x1c0] sm:$0xff] %vm1343, %v1335
  %1401 = vst.msk [vmem:[%s5 + $0x1c8] sm:$0xff] %vm1343, %v1336
  %1402 = vst.msk [vmem:[%s5 + $0x1d0] sm:$0xff] %vm1343, %v1337
  %1403 = vst.msk [vmem:[%s5 + $0x1d8] sm:$0xff] %vm1343, %v1338
  %1404 = vst.msk [vmem:[%s5 + $0x1e0] sm:$0xff] %vm1343, %v1339
  %1405 = vst.msk [vmem:[%s5 + $0x1e8] sm:$0xff] %vm1343, %v1340
  %1406 = vst.msk [vmem:[%s5 + $0x1f0] sm:$0xff] %vm1343, %v1341
  %1407 = vst.msk [vmem:[%s5 + $0x1f8] sm:$0xff] %vm1343, %v1342
  // Predicated region
  $region22: #{mlp_forward.1} parent=0 // pred_check
    _
  $region23: #{mlp_forward.1} parent=0 // pred_check_branch
    %1409 = sbr.rel (0) target = $region25
  $region24: #{mlp_forward.1} parent=0 // pred_region
    _
  $region25: #{mlp_forward.1} parent=0 // pred_fallthru
    _
  // Predicated region
  $region26: #{mlp_forward.1} parent=0 // pred_check
    _
  $region27: #{mlp_forward.1} parent=0 // pred_check_branch
    %1411 = sbr.rel (0) target = $region29
  $region28: #{mlp_forward.1} parent=0 // pred_region
    _
  $region29: #{mlp_forward.1} parent=0 // pred_fallthru
    _

</llo_original>
